<compile_context>
chip_gen: v7x
topology: tpu7x:2x2x1
jax: 0.10.0
libtpu: 0.0.40
codegen_flags: <defaults>
</compile_context>

<pallas_src>
import functools

import jax
import jax.numpy as jnp
import numpy as np
from jax import lax
from jax.experimental import pallas as pl
from jax.experimental.pallas import tpu as pltpu


MATMUL_DTYPE = jnp.bfloat16  # MXU-native matmul operand dtype; accumulation is f32.

_VMEM = pl.BlockSpec(memory_space=pltpu.MemorySpace.VMEM)
_COMPILER_PARAMS = pltpu.CompilerParams(vmem_limit_bytes=32 * 1024 * 1024)


# ----------------------------- Pallas kernels ------------------------------


def _proj_kernel(x_ref, w_ref, b_ref, o_ref):
    """Input-side gate pre-activations for both directions of one layer.

    x: (T*B, D_in) bf16, w: (D_in, 8H) bf16, b: (1, 8H) f32 -> o: (T*B, 8H) f32
    """
    o_ref[...] = (
        jnp.dot(x_ref[...], w_ref[...], preferred_element_type=jnp.float32)
        + b_ref[...]
    )


def _bilstm_kernel(gxf_ref, gxr_ref, whf_ref, whr_ref, out_ref,
                   hf_buf, hr_buf, *, unroll):
    """Fused fwd+rev LSTM recurrence for one layer.

    gxf/gxr:  (T, B, 4H) f32  precomputed x @ W_ih + (b_ih + b_hh), per direction.
    whf/whr:  (H, 4H)    bf16 recurrent weights (transposed).
    out:      (T, B, 2H) f32  [h_fwd | h_rev] at each (t, b).
    hf_buf/hr_buf: (T, B, H) f32 scratch holding per-direction hidden history.
    """
    T, B, G = gxf_ref.shape
    H = G // 4

    whf = whf_ref[...]
    whr = whr_ref[...]

    # Static lane mask selecting the tanh-gate (g) lanes; hoisted out of the loop.
    lane = lax.broadcasted_iota(jnp.int32, (B, G), 1)
    is_g = (lane >= 2 * H) & (lane < 3 * H)

    def cell(gates, c):
        # Full-width activations on the whole (B, 4H) vreg + one select,
        # instead of four sub-128-lane sliced activations.
        act = jnp.where(is_g, jnp.tanh(gates), jax.nn.sigmoid(gates))
        i_g = act[:, 0 * H:1 * H]
        f_g = act[:, 1 * H:2 * H]
        g_g = act[:, 2 * H:3 * H]
        o_g = act[:, 3 * H:4 * H]
        c_new = f_g * c + i_g * g_g
        h_new = o_g * jnp.tanh(c_new)
        return h_new, c_new

    def step(s, carry):
        hf, cf, hr, cr = carry
        # Two independent recurrence streams (fwd at time s, rev at time T-1-s);
        # only the small h @ W_hh matmul remains on the serial critical path.
        gates_f = gxf_ref[s] + jnp.dot(
            hf.astype(MATMUL_DTYPE), whf, preferred_element_type=jnp.float32)
        gates_r = gxr_ref[T - 1 - s] + jnp.dot(
            hr.astype(MATMUL_DTYPE), whr, preferred_element_type=jnp.float32)
        hf_new, cf_new = cell(gates_f, cf)
        hr_new, cr_new = cell(gates_r, cr)
        hf_buf[s] = hf_new
        hr_buf[T - 1 - s] = hr_new
        return hf_new, cf_new, hr_new, cr_new

    zeros = jnp.zeros((B, H), jnp.float32)
    lax.fori_loop(0, T, step, (zeros, zeros, zeros, zeros), unroll=unroll)

    # Single dense store of the whole layer output; no XLA concat outside.
    out_ref[...] = jnp.concatenate([hf_buf[...], hr_buf[...]], axis=-1).astype(
        out_ref.dtype)


def _fc_kernel(x_ref, w_ref, b_ref, o_ref):
    """out = x @ W + b.  W/b/out are lane-padded to a multiple of 128."""
    o_ref[...] = (
        jnp.dot(x_ref[...], w_ref[...], preferred_element_type=jnp.float32)
        + b_ref[...]
    ).astype(o_ref.dtype)


# ----------------------------- wrappers -------------------------------------


def run_proj(x2d, w_both, b_both):
    n = x2d.shape[0]
    g2 = w_both.shape[1]
    return pl.pallas_call(
        _proj_kernel,
        out_shape=jax.ShapeDtypeStruct((n, g2), jnp.float32),
        in_specs=[_VMEM, _VMEM, _VMEM],
        out_specs=_VMEM,
        compiler_params=_COMPILER_PARAMS,
    )(x2d.astype(MATMUL_DTYPE), w_both.astype(MATMUL_DTYPE), b_both)


def run_bilstm(gxf, gxr, whh_f_t, whh_r_t):
    T, B, G = gxf.shape
    H = G // 4
    unroll = True if T <= 16 else 8
    kernel = functools.partial(_bilstm_kernel, unroll=unroll)
    return pl.pallas_call(
        kernel,
        out_shape=jax.ShapeDtypeStruct((T, B, 2 * H), jnp.float32),
        in_specs=[_VMEM, _VMEM, _VMEM, _VMEM],
        out_specs=_VMEM,
        scratch_shapes=[pltpu.VMEM((T, B, H), jnp.float32),
                        pltpu.VMEM((T, B, H), jnp.float32)],
        compiler_params=_COMPILER_PARAMS,
    )(gxf, gxr, whh_f_t.astype(MATMUL_DTYPE), whh_r_t.astype(MATMUL_DTYPE))


def run_fc(rows, w_t, bias):
    n = rows.shape[0]
    o = w_t.shape[1]
    o_pad = ((o + 127) // 128) * 128            # lane-dense output stores
    w_pad = jnp.pad(w_t, ((0, 0), (0, o_pad - o)))
    b_pad = jnp.pad(bias, ((0, 0), (0, o_pad - o)))
    out = pl.pallas_call(
        _fc_kernel,
        out_shape=jax.ShapeDtypeStruct((n, o_pad), jnp.float32),
        in_specs=[_VMEM, _VMEM, _VMEM],
        out_specs=_VMEM,
        compiler_params=_COMPILER_PARAMS,
    )(rows, w_pad, b_pad)
    return out[:, :o]


# ----------------------------- params ---------------------------------------


def init_params(key, input_size, hidden_size, num_layers, output_size):
    """Deterministic init mimicking PyTorch's uniform(-1/sqrt(H), 1/sqrt(H))."""
    k = 1.0 / np.sqrt(hidden_size)
    H = hidden_size
    params = {"lstm": [], "fc": None}
    for layer in range(num_layers):
        d_in = input_size if layer == 0 else 2 * hidden_size
        per_dir = []
        for _direction in range(2):  # 0 = forward, 1 = reverse
            key, k1, k2, k3, k4 = jax.random.split(key, 5)
            w_ih = jax.random.uniform(k1, (4 * H, d_in), jnp.float32, -k, k)
            w_hh = jax.random.uniform(k2, (4 * H, H), jnp.float32, -k, k)
            b_ih = jax.random.uniform(k3, (4 * H,), jnp.float32, -k, k)
            b_hh = jax.random.uniform(k4, (4 * H,), jnp.float32, -k, k)
            per_dir.append((w_ih, w_hh, b_ih, b_hh))
        (wih_f, whh_f, bih_f, bhh_f), (wih_r, whh_r, bih_r, bhh_r) = per_dir
        params["lstm"].append({
            # packed for the projection kernel: (D_in, 8H) / (1, 8H)
            "w_ih_both": jnp.concatenate([wih_f.T, wih_r.T], axis=1),
            "b_both": jnp.concatenate([bih_f + bhh_f,
                                       bih_r + bhh_r]).reshape(1, 8 * H),
            # recurrent weights (H, 4H) per direction
            "w_hh_f": whh_f.T,
            "w_hh_r": whh_r.T,
        })
    kf = 1.0 / np.sqrt(2 * H)
    key, k1, k2 = jax.random.split(key, 3)
    w_fc = jax.random.uniform(k1, (output_size, 2 * H), jnp.float32, -kf, kf)
    b_fc = jax.random.uniform(k2, (output_size,), jnp.float32, -kf, kf)
    params["fc"] = (w_fc.T, b_fc.reshape(1, output_size))
    return params


# ----------------------------- forward ---------------------------------------


def rnn_forward(x_btd, params, num_layers, hidden_size):
    """Reproduces RNN.forward: bi-LSTM over x, then fc on zero-sum (b, t) rows."""
    B, T, _ = x_btd.shape
    H = hidden_size

    # --- pixel_to_predict = (sum(x, dim=2) == 0).nonzero() ---
    # Dynamic output size -> resolved on host up-front (only needs x), so the
    # LSTM kernels below are dispatched without a later device->host sync
    # sitting between them and the fc.
    mask = np.asarray(jnp.sum(x_btd, axis=2) == 0)            # (B, T) bool
    b_idx, t_idx = np.nonzero(mask)                           # == torch.nonzero order

    # --- LSTM stack (Pallas kernels), time-major ---
    layer_in = jnp.transpose(x_btd, (1, 0, 2)).astype(jnp.float32)  # (T, B, D)
    for layer in range(num_layers):
        p = params["lstm"][layer]
        x2d = layer_in.reshape(T * B, layer_in.shape[-1])
        gx = run_proj(x2d, p["w_ih_both"], p["b_both"])             # (T*B, 8H)
        gx3 = gx.reshape(T, B, 8 * H)
        gxf, gxr = gx3[:, :, :4 * H], gx3[:, :, 4 * H:]
        layer_in = run_bilstm(gxf, gxr, p["w_hh_f"], p["w_hh_r"])   # (T, B, 2H)
        # TODO(synk): dropout(p=0.3) between layers omitted (eval semantics).
    lstm_out = jnp.transpose(layer_in, (1, 0, 2))                   # (B, T, 2H)

    # --- fc on the selected rows (Pallas kernel, lane-padded output) ---
    rows = lstm_out[jnp.asarray(b_idx), jnp.asarray(t_idx)]         # (N, 2H)
    w_fc_t, b_fc = params["fc"]
    return run_fc(rows, w_fc_t, b_fc)


# ----------------------------- reference (pure JAX) --------------------------
# Mirrors the kernels' mixed precision: bf16 matmul operands, f32 accumulation,
# f32 elementwise gate/cell math.


def _lstm_dir_ref(x_tbd, w_ih_t, w_hh_t, bias, reverse):
    T, B, _ = x_tbd.shape
    H = w_hh_t.shape[0]
    xs = x_tbd[::-1] if reverse else x_tbd
    gx = jnp.dot(xs.astype(MATMUL_DTYPE).reshape(T * B, -1),
                 w_ih_t.astype(MATMUL_DTYPE),
                 preferred_element_type=jnp.float32).reshape(T, B, 4 * H) + bias
    whh = w_hh_t.astype(MATMUL_DTYPE)

    def step(carry, g_x):
        h, c = carry
        gates = g_x + jnp.dot(h.astype(MATMUL_DTYPE), whh,
                              preferred_element_type=jnp.float32)
        i_g = jax.nn.sigmoid(gates[:, :H])
        f_g = jax.nn.sigmoid(gates[:, H:2 * H])
        g_g = jnp.tanh(gates[:, 2 * H:3 * H])
        o_g = jax.nn.sigmoid(gates[:, 3 * H:])
        c = f_g * c + i_g * g_g
        h = o_g * jnp.tanh(c)
        return (h, c), h

    (_, _), hs = lax.scan(step, (jnp.zeros((B, H)), jnp.zeros((B, H))), gx)
    return hs[::-1] if reverse else hs


def rnn_forward_ref(x_btd, params, num_layers, hidden_size):
    H = hidden_size
    layer_in = jnp.transpose(x_btd, (1, 0, 2)).astype(jnp.float32)
    for layer in range(num_layers):
        p = params["lstm"][layer]
        outs = []
        for direction, reverse in ((0, False), (1, True)):
            sl = slice(0, 4 * H) if direction == 0 else slice(4 * H, 8 * H)
            w_hh_t = p["w_hh_f"] if direction == 0 else p["w_hh_r"]
            outs.append(_lstm_dir_ref(layer_in, p["w_ih_both"][:, sl],
                                      w_hh_t, p["b_both"][:, sl], reverse))
        layer_in = jnp.concatenate(outs, axis=-1)
    lstm_out = jnp.transpose(layer_in, (1, 0, 2))
    mask = np.asarray(jnp.sum(x_btd, axis=2) == 0)
    b_idx, t_idx = np.nonzero(mask)
    rows = lstm_out[jnp.asarray(b_idx), jnp.asarray(t_idx)]
    w_fc_t, b_fc = params["fc"]
    return jnp.dot(rows, w_fc_t) + b_fc


# ----------------------------- main ------------------------------------------


if __name__ == "__main__":
    input_size, hidden_size, num_layers, output_size = 16, 32, 2, 4
    batch, seq = 2, 8

    key = jax.random.PRNGKey(0)
    key, pkey, xkey = jax.random.split(key, 3)
    params = init_params(pkey, input_size, hidden_size, num_layers, output_size)

    x = jax.random.normal(xkey, (batch, seq, input_size), jnp.float32)
    # Zero out a few (b, t) positions so that sum(x, dim=2) == 0 selects them.
    x = x.at[0, 3, :].set(0.0)
    x = x.at[1, 0, :].set(0.0)
    x = x.at[1, 5, :].set(0.0)

    out = rnn_forward(x, params, num_layers, hidden_size)
    out = jax.block_until_ready(out)

    ref = jax.block_until_ready(rnn_forward_ref(x, params, num_layers, hidden_size))
    np.testing.assert_allclose(np.asarray(out), np.asarray(ref), rtol=5e-3, atol=5e-3)
    assert out.shape == (3, output_size)

    print("KERNEL_OK")
</pallas_src>

<mosaic_0001>
module attributes {stable_mosaic.version = 11 : i64} {
  func.func @_proj_kernel(%arg0: memref<16x16xbf16, #tpu.memory_space<vmem>>, %arg1: memref<16x256xbf16, #tpu.memory_space<vmem>>, %arg2: memref<1x256xf32, #tpu.memory_space<vmem>>, %arg3: memref<16x256xf32, #tpu.memory_space<vmem>>) attributes {dimension_semantics = [], scalar_prefetch = 0 : i64, scratch_operands = 0 : i64, tpu.core_type = #tpu.core_type<tc>} {
    %c0 = arith.constant 0 : index
    %c0_0 = arith.constant 0 : index
    %0 = vector.load %arg0[%c0, %c0_0] : memref<16x16xbf16, #tpu.memory_space<vmem>>, vector<16x16xbf16>
    %c0_1 = arith.constant 0 : index
    %c0_2 = arith.constant 0 : index
    %1 = vector.load %arg1[%c0_1, %c0_2] : memref<16x256xbf16, #tpu.memory_space<vmem>>, vector<16x256xbf16>
    %cst = arith.constant dense<0.000000e+00> : vector<16x256xf32>
    %2 = tpu.matmul %0, %1, %cst {dimension_numbers = #tpu.dot_dimension_numbers<[1], [0], [0], [1], [0, 0, 1, 1], [], []>} : vector<16x16xbf16>, vector<16x256xbf16>, vector<16x256xf32> -> vector<16x256xf32>
    %c0_3 = arith.constant 0 : index
    %c0_4 = arith.constant 0 : index
    %3 = vector.load %arg2[%c0_3, %c0_4] : memref<1x256xf32, #tpu.memory_space<vmem>>, vector<1x256xf32>
    %4 = vector.broadcast %3 : vector<1x256xf32> to vector<16x256xf32>
    %5 = arith.addf %2, %4 : vector<16x256xf32>
    %c0_5 = arith.constant 0 : index
    %c0_6 = arith.constant 0 : index
    %6 = vector.load %arg3[%c0_5, %c0_6] : memref<16x256xf32, #tpu.memory_space<vmem>>, vector<16x256xf32>
    tpu.vector_store %arg3[%c0_5, %c0_6], %5 {strides = array<i32>} : memref<16x256xf32, #tpu.memory_space<vmem>>, vector<16x256xf32>,
    return
  }
}

</mosaic_0001>

<llo_original>
// kernel: tpu_custom_call.1
$region0: #{tpu_custom_call.1}
  #allocation0 [shape = 'u32[]', space=smem, size = 0x4, offset = 0x4, fixed_abs, tag = 'smem constant byte address 0x4 - core index']
  #allocation1 [shape = 'u32[144,128]{1,0:T(1,128)}', space=vmem, size = 0x12000, scoped, tag = 'internal scratch']
  %s0 = inlined_call_operand.hbm [shape: bf16[16,16], index: 0, kind: input, shape index: {}]
  %s1 = inlined_call_operand.hbm [shape: bf16[16,256], index: 1, kind: input, shape index: {}]
  %s2 = inlined_call_operand.vmem [shape: f32[1,256], index: 2, kind: input, shape index: {}]
  %s3 = inlined_call_operand.hbm [shape: f32[16,256], index: 3, kind: output, shape index: {}]
  %s4 = sld [smem:[#allocation0]]
  $region30: #{tpu_custom_call.1} parent=0
    _
  %s6 = ssub.s32 1, %s4
  %s7 = scalar_select 0, %s6, %s4
  $region1: #{tpu_custom_call.1} parent=0
    #allocation2 [shape = 'u8[4096]{0}', space=vmem, size = 0x1000, scoped, tag = 'input window, operand 0, single buffered']
    #allocation3 [shape = 's32[1]{0}', space=sflag, size = 0x4, scoped, tag = 'scoped memory for tpu_custom_call.1']
    #allocation4 [shape = 's32[1]{0}', space=sflag, size = 0x4, scoped, tag = 'scoped memory for tpu_custom_call.1']
    #allocation5 [shape = 'u8[8192]{0}', space=vmem, size = 0x2000, scoped, tag = 'input window, operand 1, single buffered']
    #allocation6 [shape = 's32[1]{0}', space=sflag, size = 0x4, scoped, tag = 'scoped memory for tpu_custom_call.1']
    #allocation7 [shape = 'u8[16384]{0}', space=vmem, size = 0x4000, scoped, tag = 'output window, operand 0, single buffered']
    %8 = vsyncpa [#allocation3], 0
    %9 = vsyncpa [#allocation6], 0
    %10 = vsyncpa [#allocation4], 0
    // Predicated region
    $region2: #{tpu_custom_call.1} parent=1 // pred_check
      _
    $region3: #{tpu_custom_call.1} parent=1 // pred_check_branch
      %12 = sbr.rel (0) target = $region5
    $region4: #{tpu_custom_call.1} parent=1 // pred_region
      %s14 = ssub.s32 128, 128
      %15 = vsyncadd [#allocation3], %s14
      %s16 = sshll.u32 [#allocation2], 4
      %s17 = int_to_ptr.vmem [resolvable:$true] %s16
      %22 = dma.hbm_to_vmem [thread:$0]  %s0, 128, %s17, [#allocation3], 64, 64, 4
    $region5: #{tpu_custom_call.1} parent=1 // pred_fallthru
      _
    // Predicated region
    $region6: #{tpu_custom_call.1} parent=1 // pred_check
      _
    $region7: #{tpu_custom_call.1} parent=1 // pred_check_branch
      %24 = sbr.rel (0) target = $region9
    $region8: #{tpu_custom_call.1} parent=1 // pred_region
      %s26 = ssub.s32 256, 256
      %27 = vsyncadd [#allocation6], %s26
      %s28 = sshll.u32 [#allocation5], 4
      %s29 = int_to_ptr.vmem [resolvable:$true] %s28
      %34 = dma.hbm_to_vmem [thread:$0]  %s1, 256, %s29, [#allocation6], 128, 128, 8
    $region9: #{tpu_custom_call.1} parent=1 // pred_fallthru
      _
    // Predicated region
    $region10: #{tpu_custom_call.1} parent=1 // pred_check
      _
    $region11: #{tpu_custom_call.1} parent=1 // pred_check_branch
      %36 = sbr.rel (0) target = $region13
    $region12: #{tpu_custom_call.1} parent=1 // pred_region
      _
    $region13: #{tpu_custom_call.1} parent=1 // pred_fallthru
      _
    // Predicated region
    $region14: #{tpu_custom_call.1} parent=1 // pred_check
      _
    $region15: #{tpu_custom_call.1} parent=1 // pred_check_branch
      %38 = sbr.rel (0) target = $region17
    $region16: #{tpu_custom_call.1} parent=1 // pred_region
      %39 = dma.done [#allocation3], 128
    $region17: #{tpu_custom_call.1} parent=1 // pred_fallthru
      _
    // Predicated region
    $region18: #{tpu_custom_call.1} parent=1 // pred_check
      _
    $region19: #{tpu_custom_call.1} parent=1 // pred_check_branch
      %41 = sbr.rel (0) target = $region21
    $region20: #{tpu_custom_call.1} parent=1 // pred_region
      %42 = dma.done [#allocation6], 256
    $region21: #{tpu_custom_call.1} parent=1 // pred_fallthru
      _
    %v44 = vld [vmem:[#allocation2] sm:$0xf]
    %v45 = vld [vmem:[#allocation2 + $0x4] sm:$0xf]
    %v46 = vld [vmem:[#allocation5] sm:$0xff]
    %v47 = vld [vmem:[#allocation5 + $0x8] sm:$0xff]
    %v48 = vld [vmem:[%s2] sm:$0x3]
    %v50 = vlaneseq
    %v51 = vshrl.u32 %v50, 7
    %v52 = vsub.s32 0, %v51
    %v53 = vrot.slane %v48, %v52
    %v54 = vlaneseq
    %v55 = vshrl.u32 %v54, 7
    %v56 = vsub.s32 1, %v55
    %v57 = vrot.slane %v48, %v56
    %v62 = vunpack.c.l.b16 %v44
    %v63 = vunpack.c.l.b16 %v45
    %v64 = vpack.c.b16 %v63, %v62
    %v67 = vunpack.c.l.b16 %v46
    %v68 = vunpack.c.h.b16 %v46
    %v69 = vunpack.c.l.b16 %v47
    %v70 = vunpack.c.h.b16 %v47
    %v71 = vpack.c.b16 %v69, %v67
    %v72 = vpack.c.b16 %v70, %v68
    %vm75 = vcmask 130048
    %v77 = vsel %vm75, %v64, 0
    %79 = vmatprep.subr.bf16.mxu0 %v72
    %80 = vmatpush1.bf16.msra.mxu0 %v71
    %81 = vmatprep.subr.bf16.mxu0 0
    %82 = vmatpush1.bf16.msra.mxu0 0
    %83 = vmatprep.subr.bf16.mxu0 0
    %84 = vmatpush1.bf16.msra.mxu0 0
    %85 = vmatprep.subr.bf16.mxu0 0
    %86 = vmatpush1.bf16.msra.mxu0 0
    %87 = vmatprep.subr.bf16.mxu0 0
    %88 = vmatpush1.bf16.msra.mxu0 0
    %89 = vmatprep.subr.bf16.mxu0 0
    %90 = vmatpush1.bf16.msra.mxu0 0
    %91 = vmatprep.subr.bf16.mxu0 0
    %92 = vmatpush1.bf16.msra.mxu0 0
    %93 = vmatprep.subr.bf16.mxu0 0
    %94 = vmatpush1.bf16.msra.mxu0 0
    %95 = vmatprep.subr.bf16.mxu0 0
    %96 = vmatpush1.bf16.msra.mxu0 0
    %97 = vmatprep.subr.bf16.mxu0 0
    %98 = vmatpush1.bf16.msra.mxu0 0
    %99 = vmatprep.subr.bf16.mxu0 0
    %100 = vmatpush1.bf16.msra.mxu0 0
    %101 = vmatprep.subr.bf16.mxu0 0
    %102 = vmatpush1.bf16.msra.mxu0 0
    %103 = vmatprep.subr.bf16.mxu0 0
    %104 = vmatpush1.bf16.msra.mxu0 0
    %105 = vmatprep.subr.bf16.mxu0 0
    %106 = vmatpush1.bf16.msra.mxu0 0
    %107 = vmatprep.subr.bf16.mxu0 0
    %108 = vmatpush1.bf16.msra.mxu0 0
    %109 = vmatprep.subr.bf16.mxu0 0
    %110 = vmatpush1.bf16.msra.mxu0 0
    %111 = vmatprep.mubr.bf16.mxu0 0
    %112 = vmatmul.mubr.bf16.gmra.mrb[0].mxu0 %v77
    %v113 = vpop.f32.mrb[0].mxu0
    %v114 = vadd.f32 %v53, %v113
    %v115 = vpop.f32.mrb[0].mxu0
    %v116 = vadd.f32 %v57, %v115
    %v117 = vpop.f32.mrb[0].mxu0
    %v118 = vadd.f32 %v53, %v117
    %v119 = vpop.f32.mrb[0].mxu0
    %v120 = vadd.f32 %v57, %v119
    %121 = vdwg.mxu0
    %122 = vst [vmem:[#allocation7] sm:$0xff] %v114
    %123 = vst [vmem:[#allocation7 + $0x8] sm:$0xff] %v116
    %124 = vst [vmem:[#allocation7 + $0x10] sm:$0xff] %v118
    %125 = vst [vmem:[#allocation7 + $0x18] sm:$0xff] %v120
    // Predicated region
    $region22: #{tpu_custom_call.1} parent=1 // pred_check
      _
    $region23: #{tpu_custom_call.1} parent=1 // pred_check_branch
      %127 = sbr.rel (0) target = $region25
    $region24: #{tpu_custom_call.1} parent=1 // pred_region
      %s129 = ssub.s32 512, 512
      %130 = vsyncadd [#allocation4], %s129
      %s131 = sshll.u32 [#allocation7], 4
      %s132 = int_to_ptr.vmem [resolvable:$true] %s131
      %137 = dma.vmem_to_hbm [thread:$0]  %s132, 512, %s3, [#allocation4], 256, 256, 16
    $region25: #{tpu_custom_call.1} parent=1 // pred_fallthru
      _
    // Predicated region
    $region26: #{tpu_custom_call.1} parent=1 // pred_check
      _
    $region27: #{tpu_custom_call.1} parent=1 // pred_check_branch
      %139 = sbr.rel (0) target = $region29
    $region28: #{tpu_custom_call.1} parent=1 // pred_region
      %140 = dma.done [#allocation4], 512
    $region29: #{tpu_custom_call.1} parent=1 // pred_fallthru
      _
    %141 = vsyncpa [#allocation3], 1
    %142 = vsyncpa [#allocation6], 1
    %143 = vsyncpa [#allocation4], 1

</llo_original>
